<compile_context>
chip_gen: v7x
topology: tpu7x:2x2x1
jax: 0.10.0
libtpu: 0.0.40
codegen_flags: <defaults>
</compile_context>

<pallas_src>
import math
from functools import partial

import jax
import jax.numpy as jnp
from jax.experimental import pallas as pl
from jax.experimental.pallas import tpu as pltpu


# ------------------------------ tiling helpers ------------------------------

def _round_up(n, m):
    return ((n + m - 1) // m) * m


def _row_grid(n, max_tm=256):
    """Pick a row tile (multiple of 8, capped) and the padded row count."""
    tm = min(max_tm, _round_up(n, 8))
    n_pad = _round_up(n, tm)
    return tm, n_pad


def _pad_rows(a, n_pad):
    n = a.shape[0]
    if n == n_pad:
        return a
    return jnp.pad(a, ((0, n_pad - n), (0, 0)))


def _ln(x, g, b, eps):
    mu = jnp.mean(x, axis=-1, keepdims=True)
    var = jnp.mean((x - mu) ** 2, axis=-1, keepdims=True)
    return (x - mu) * jax.lax.rsqrt(var + eps) * g + b


# ----------------------------- Pallas kernels ------------------------------

def _ln_matmul_kernel(x_ref, g_ref, b_ref, w_ref, bias_ref, o_ref, *, eps):
    """out = LayerNorm(x) @ W + bias   (W already [din, dout])."""
    t = _ln(x_ref[...], g_ref[...], b_ref[...], eps)
    y = jnp.dot(t, w_ref[...], preferred_element_type=jnp.float32) + bias_ref[...]
    o_ref[...] = y.astype(o_ref.dtype)


def _ln_matmul3_kernel(x_ref, k_ref, v_ref, g_ref, b_ref,
                       wa_ref, wb_ref, wc_ref, bias_ref, o_ref, *, eps):
    """out = LN(x) @ Wa + k @ Wb + v @ Wc + bias  (folded concat([ln(x),k,v]))."""
    t = _ln(x_ref[...], g_ref[...], b_ref[...], eps)
    y = (jnp.dot(t, wa_ref[...], preferred_element_type=jnp.float32)
         + jnp.dot(k_ref[...], wb_ref[...], preferred_element_type=jnp.float32)
         + jnp.dot(v_ref[...], wc_ref[...], preferred_element_type=jnp.float32)
         + bias_ref[...])
    o_ref[...] = y.astype(o_ref.dtype)


def _matmul_bias_residual_kernel(x_ref, w_ref, bias_ref, r_ref, o_ref):
    """out = x @ W + bias + residual  (fused output projection epilogue)."""
    y = (jnp.dot(x_ref[...], w_ref[...], preferred_element_type=jnp.float32)
         + bias_ref[...] + r_ref[...])
    o_ref[...] = y.astype(o_ref.dtype)


def _ln_ffn_residual_kernel(x_ref, g_ref, b_ref, w1_ref, b1_ref, w2_ref, b2_ref,
                            o_ref, *, eps):
    """out = x + Linear2(ReLU(Linear1(LN(x)))) — hidden activation stays on-chip."""
    x = x_ref[...]
    t = _ln(x, g_ref[...], b_ref[...], eps)
    h = jnp.maximum(jnp.dot(t, w1_ref[...], preferred_element_type=jnp.float32)
                    + b1_ref[...], 0.0)
    y = jnp.dot(h, w2_ref[...], preferred_element_type=jnp.float32) + b2_ref[...] + x
    o_ref[...] = y.astype(o_ref.dtype)


def _attention_kernel(*refs, scale, n_head, d_k, masked):
    """All heads of one batch element per grid step.

    q/k/v blocks: (1, H, S, d_k); optional mask: (S, S); out block: (1, S, H*d_k)
    written head-contiguously so no XLA transpose is needed afterwards.
    """
    if masked:
        q_ref, k_ref, v_ref, mask_ref, o_ref = refs
    else:
        q_ref, k_ref, v_ref, o_ref = refs

    q = q_ref[0].astype(jnp.float32) * scale          # [H, S, dk] (scale folded into q)
    k = k_ref[0]
    v = v_ref[0]

    s = jnp.einsum('hqd,hkd->hqk', q, k,
                   preferred_element_type=jnp.float32)          # [H, S, S]
    if masked:
        mvals = mask_ref[...]                                   # [S, S]
        s = jnp.where((mvals == 0.0)[None, :, :],
                      jnp.float32(-9000000000000000.0), s)

    m = jnp.max(s, axis=-1, keepdims=True)
    e = jnp.exp(s - m)
    l = jnp.sum(e, axis=-1, keepdims=True)
    p = e * pl.reciprocal(l, approx=False)   # one reciprocal per row (approx=True -> EUP)
    o = jnp.einsum('hqk,hkd->hqd', p, v,
                   preferred_element_type=jnp.float32)          # [H, S, dk]

    # head-contiguous layout [S, H*dk] written directly (replaces permute+reshape).
    o_ref[0] = jnp.concatenate([o[h] for h in range(n_head)],
                               axis=-1).astype(o_ref.dtype)


# ------------------------------ kernel wrappers ------------------------------

_CP = pltpu.CompilerParams(dimension_semantics=("parallel",))


def fused_ln_linear(x2d, gamma, beta, w_t, bias, eps=1e-5):
    n, din = x2d.shape
    dout = w_t.shape[1]
    tm, n_pad = _row_grid(n)
    xp = _pad_rows(x2d, n_pad)
    out = pl.pallas_call(
        partial(_ln_matmul_kernel, eps=eps),
        out_shape=jax.ShapeDtypeStruct((n_pad, dout), x2d.dtype),
        grid=(n_pad // tm,),
        in_specs=[
            pl.BlockSpec((tm, din), lambda i: (i, 0)),
            pl.BlockSpec((1, din), lambda i: (0, 0)),
            pl.BlockSpec((1, din), lambda i: (0, 0)),
            pl.BlockSpec((din, dout), lambda i: (0, 0)),
            pl.BlockSpec((1, dout), lambda i: (0, 0)),
        ],
        out_specs=pl.BlockSpec((tm, dout), lambda i: (i, 0)),
        compiler_params=_CP,
    )(xp, gamma.reshape(1, din), beta.reshape(1, din), w_t, bias.reshape(1, dout))
    return out[:n] if n_pad != n else out


def fused_ln_linear3(x2d, k2d, v2d, gamma, beta, wa_t, wb_t, wc_t, bias, eps=1e-5):
    n, din = x2d.shape
    dout = wa_t.shape[1]
    tm, n_pad = _row_grid(n)
    xp, kp, vp = _pad_rows(x2d, n_pad), _pad_rows(k2d, n_pad), _pad_rows(v2d, n_pad)
    out = pl.pallas_call(
        partial(_ln_matmul3_kernel, eps=eps),
        out_shape=jax.ShapeDtypeStruct((n_pad, dout), x2d.dtype),
        grid=(n_pad // tm,),
        in_specs=[
            pl.BlockSpec((tm, din), lambda i: (i, 0)),
            pl.BlockSpec((tm, din), lambda i: (i, 0)),
            pl.BlockSpec((tm, din), lambda i: (i, 0)),
            pl.BlockSpec((1, din), lambda i: (0, 0)),
            pl.BlockSpec((1, din), lambda i: (0, 0)),
            pl.BlockSpec((din, dout), lambda i: (0, 0)),
            pl.BlockSpec((din, dout), lambda i: (0, 0)),
            pl.BlockSpec((din, dout), lambda i: (0, 0)),
            pl.BlockSpec((1, dout), lambda i: (0, 0)),
        ],
        out_specs=pl.BlockSpec((tm, dout), lambda i: (i, 0)),
        compiler_params=_CP,
    )(xp, kp, vp, gamma.reshape(1, din), beta.reshape(1, din),
      wa_t, wb_t, wc_t, bias.reshape(1, dout))
    return out[:n] if n_pad != n else out


def linear_residual(x2d, w_t, bias, res2d):
    n, din = x2d.shape
    dout = w_t.shape[1]
    tm, n_pad = _row_grid(n)
    xp, rp = _pad_rows(x2d, n_pad), _pad_rows(res2d, n_pad)
    out = pl.pallas_call(
        _matmul_bias_residual_kernel,
        out_shape=jax.ShapeDtypeStruct((n_pad, dout), x2d.dtype),
        grid=(n_pad // tm,),
        in_specs=[
            pl.BlockSpec((tm, din), lambda i: (i, 0)),
            pl.BlockSpec((din, dout), lambda i: (0, 0)),
            pl.BlockSpec((1, dout), lambda i: (0, 0)),
            pl.BlockSpec((tm, dout), lambda i: (i, 0)),
        ],
        out_specs=pl.BlockSpec((tm, dout), lambda i: (i, 0)),
        compiler_params=_CP,
    )(xp, w_t, bias.reshape(1, dout), rp)
    return out[:n] if n_pad != n else out


def fused_ln_ffn_residual(x2d, gamma, beta, w1_t, b1, w2_t, b2, eps=1e-5):
    n, d = x2d.shape
    ff = w1_t.shape[1]
    tm, n_pad = _row_grid(n)
    xp = _pad_rows(x2d, n_pad)
    out = pl.pallas_call(
        partial(_ln_ffn_residual_kernel, eps=eps),
        out_shape=jax.ShapeDtypeStruct((n_pad, d), x2d.dtype),
        grid=(n_pad // tm,),
        in_specs=[
            pl.BlockSpec((tm, d), lambda i: (i, 0)),
            pl.BlockSpec((1, d), lambda i: (0, 0)),
            pl.BlockSpec((1, d), lambda i: (0, 0)),
            pl.BlockSpec((d, ff), lambda i: (0, 0)),
            pl.BlockSpec((1, ff), lambda i: (0, 0)),
            pl.BlockSpec((ff, d), lambda i: (0, 0)),
            pl.BlockSpec((1, d), lambda i: (0, 0)),
        ],
        out_specs=pl.BlockSpec((tm, d), lambda i: (i, 0)),
        compiler_params=_CP,
    )(xp, gamma.reshape(1, d), beta.reshape(1, d),
      w1_t, b1.reshape(1, ff), w2_t, b2.reshape(1, d))
    return out[:n] if n_pad != n else out


def mha_attention(q, k, v, mask):
    """q, k, v: [B, H, S, d_k]; mask: [S, S] or None -> out [B, S, H*d_k]."""
    B, H, S, dk = q.shape
    masked = mask is not None
    kernel = partial(_attention_kernel, scale=1.0 / math.sqrt(dk),
                     n_head=H, d_k=dk, masked=masked)
    in_specs = [
        pl.BlockSpec((1, H, S, dk), lambda b: (b, 0, 0, 0)),
        pl.BlockSpec((1, H, S, dk), lambda b: (b, 0, 0, 0)),
        pl.BlockSpec((1, H, S, dk), lambda b: (b, 0, 0, 0)),
    ]
    inputs = [q, k, v]
    if masked:
        in_specs.append(pl.BlockSpec((S, S), lambda b: (0, 0)))
        inputs.append(mask)
    return pl.pallas_call(
        kernel,
        out_shape=jax.ShapeDtypeStruct((B, S, H * dk), q.dtype),
        grid=(B,),
        in_specs=in_specs,
        out_specs=pl.BlockSpec((1, S, H * dk), lambda b: (b, 0, 0)),
        compiler_params=_CP,
    )(*inputs)


# --------------------------- module forward (glue) --------------------------

def decoder_layer_forward(x, k_in, v_in, mask, pp, n_head, d_k):
    B, S, d_model = x.shape
    n = B * S
    x2 = x.reshape(n, d_model)

    # --- block 1: LN1 -> (repeat folded into W) QKV -> masked MHA -> o_proj + residual
    qkv = fused_ln_linear(x2, pp["ln1_g"], pp["ln1_b"], pp["qkv1_wt"], pp["qkv1_b"])
    # module's exact row-major reinterpretation: [B,S,3*H*dk] -> [B,H,S,3*dk]
    qkv = qkv.reshape(B, n_head, S, 3 * d_k)
    q, kk, vv = jnp.split(qkv, 3, axis=-1)                 # each [B, H, S, dk]
    attn = mha_attention(q, kk, vv, mask)                  # [B, S, H*dk], head-contiguous
    x2 = linear_residual(attn.reshape(n, n_head * d_k), pp["o1_wt"], pp["o1_b"], x2)

    # --- block 2: LN2 + (concat folded into 3 weight slices) QKV -> MHA (no mask) -> o_proj + residual
    qkv = fused_ln_linear3(x2, k_in.reshape(n, d_model), v_in.reshape(n, d_model),
                           pp["ln2_g"], pp["ln2_b"],
                           pp["qkv2a_wt"], pp["qkv2b_wt"], pp["qkv2c_wt"], pp["qkv2_b"])
    qkv = qkv.reshape(B, n_head, S, 3 * d_k)
    q, kk, vv = jnp.split(qkv, 3, axis=-1)
    attn = mha_attention(q, kk, vv, None)
    x2 = linear_residual(attn.reshape(n, n_head * d_k), pp["o2_wt"], pp["o2_b"], x2)

    # --- block 3: LN3 -> Linear -> ReLU -> Linear -> residual (single fused kernel)
    x2 = fused_ln_ffn_residual(x2, pp["ln3_g"], pp["ln3_b"],
                               pp["ff1_wt"], pp["ff1_b"], pp["ff2_wt"], pp["ff2_b"])
    return x2.reshape(B, S, d_model)


# ------------------------------ parameters ---------------------------------

def xavier_uniform(key, shape):
    fan_out, fan_in = shape
    a = math.sqrt(6.0 / (fan_in + fan_out))
    return jax.random.uniform(key, shape, jnp.float32, -a, a)


def init_params(key, n_head, d_model, d_k, ff_dim):
    keys = jax.random.split(key, 6)

    def mha_params(k1, k2, input_dim):
        return {
            "qkv_w": xavier_uniform(k1, (3 * d_k * n_head, input_dim)),
            "qkv_b": jnp.zeros((3 * d_k * n_head,), jnp.float32),
            "o_w": xavier_uniform(k2, (d_k * n_head, d_k * n_head)),
            "o_b": jnp.zeros((d_k * n_head,), jnp.float32),
        }

    return {
        "mha1": mha_params(keys[0], keys[1], 3 * d_model),
        "mha2": mha_params(keys[2], keys[3], 3 * d_model),
        "ff1_w": xavier_uniform(keys[4], (ff_dim, d_model)),
        "ff1_b": jnp.zeros((ff_dim,), jnp.float32),
        "ff2_w": xavier_uniform(keys[5], (d_model, ff_dim)),
        "ff2_b": jnp.zeros((d_model,), jnp.float32),
        "ln1_g": jnp.ones((d_model,), jnp.float32), "ln1_b": jnp.zeros((d_model,), jnp.float32),
        "ln2_g": jnp.ones((d_model,), jnp.float32), "ln2_b": jnp.zeros((d_model,), jnp.float32),
        "ln3_g": jnp.ones((d_model,), jnp.float32), "ln3_b": jnp.zeros((d_model,), jnp.float32),
    }


def prepare_params(p, d_model):
    """One-time weight preprocessing: transpose to [din, dout] for the MXU and
    fold the repeat(1,1,3) / cat([ln(x),k,v]) structure into the QKV weights."""
    def slice3_t(w):  # w: [dout, 3*d_model] -> three [d_model, dout] slices
        return (jnp.transpose(w[:, :d_model]),
                jnp.transpose(w[:, d_model:2 * d_model]),
                jnp.transpose(w[:, 2 * d_model:]))

    a1, b1, c1 = slice3_t(p["mha1"]["qkv_w"])
    a2, b2, c2 = slice3_t(p["mha2"]["qkv_w"])
    return {
        "ln1_g": p["ln1_g"], "ln1_b": p["ln1_b"],
        "ln2_g": p["ln2_g"], "ln2_b": p["ln2_b"],
        "ln3_g": p["ln3_g"], "ln3_b": p["ln3_b"],
        "qkv1_wt": a1 + b1 + c1,               # repeat(1,1,3) folded (distributivity)
        "qkv1_b": p["mha1"]["qkv_b"],
        "o1_wt": jnp.transpose(p["mha1"]["o_w"]), "o1_b": p["mha1"]["o_b"],
        "qkv2a_wt": a2, "qkv2b_wt": b2, "qkv2c_wt": c2,   # concat folded
        "qkv2_b": p["mha2"]["qkv_b"],
        "o2_wt": jnp.transpose(p["mha2"]["o_w"]), "o2_b": p["mha2"]["o_b"],
        "ff1_wt": jnp.transpose(p["ff1_w"]), "ff1_b": p["ff1_b"],
        "ff2_wt": jnp.transpose(p["ff2_w"]), "ff2_b": p["ff2_b"],
    }


# ----------------------------- pure-JAX reference ---------------------------

def _ref_mha(x, mask, p, n_head, d_k):
    B, S, _ = x.shape
    mm = partial(jnp.matmul, precision=jax.lax.Precision.HIGHEST)
    h = mm(x, p["qkv_w"].T) + p["qkv_b"]
    h = h.reshape(B, n_head, S, 3 * d_k)
    q, k, v = jnp.split(h, 3, axis=-1)
    s = mm(q, jnp.swapaxes(k, -1, -2)) / math.sqrt(d_k)
    if mask is not None:
        s = jnp.where(mask == 0, -9000000000000000.0, s)
    a = jax.nn.softmax(s, axis=-1)
    o = mm(a, v).transpose(0, 2, 1, 3).reshape(B, S, -1)
    return mm(o, p["o_w"].T) + p["o_b"]


def _ref_layer(x, k, v, mask, params, n_head, d_k):
    def ln(z, g, b):
        mu = z.mean(-1, keepdims=True)
        var = ((z - mu) ** 2).mean(-1, keepdims=True)
        return (z - mu) / jnp.sqrt(var + 1e-5) * g + b
    mm = partial(jnp.matmul, precision=jax.lax.Precision.HIGHEST)
    t = jnp.tile(ln(x, params["ln1_g"], params["ln1_b"]), (1, 1, 3))
    x = x + _ref_mha(t, mask, params["mha1"], n_head, d_k)
    t = jnp.concatenate([ln(x, params["ln2_g"], params["ln2_b"]), k, v], axis=-1)
    x = x + _ref_mha(t, None, params["mha2"], n_head, d_k)
    t = ln(x, params["ln3_g"], params["ln3_b"])
    h = jnp.maximum(mm(t, params["ff1_w"].T) + params["ff1_b"], 0.0)
    return x + mm(h, params["ff2_w"].T) + params["ff2_b"]


# --------------------------------- driver -----------------------------------

if __name__ == "__main__":
    n_head, d_k = 4, 8
    d_model = n_head * d_k          # 32
    ff_dim = 64
    B, S = 2, 8

    key = jax.random.PRNGKey(0)
    kx, kk, kv, kp = jax.random.split(key, 4)
    x = jax.random.normal(kx, (B, S, d_model), jnp.float32)
    k_in = jax.random.normal(kk, (B, S, d_model), jnp.float32)
    v_in = jax.random.normal(kv, (B, S, d_model), jnp.float32)
    mask = jnp.tril(jnp.ones((S, S), jnp.float32))   # causal mask, broadcast over heads
    params = init_params(kp, n_head, d_model, d_k, ff_dim)
    pp = prepare_params(params, d_model)             # one-time: transpose + fold weights

    out = decoder_layer_forward(x, k_in, v_in, mask, pp, n_head, d_k)
    out = jax.block_until_ready(out)

    ref = _ref_layer(x, k_in, v_in, mask, params, n_head, d_k)
    assert out.shape == (B, S, d_model)
    max_err = float(jnp.max(jnp.abs(out - ref)))
    assert jnp.allclose(out, ref, atol=1e-3, rtol=1e-3), f"max_err={max_err}"
    print("KERNEL_OK")
</pallas_src>

<mosaic_0001>
module attributes {stable_mosaic.version = 11 : i64} {
  func.func @_ln_matmul_kernel(%arg0: i32, %arg1: memref<16x32xf32, #tpu.memory_space<vmem>>, %arg2: memref<1x32xf32, #tpu.memory_space<vmem>>, %arg3: memref<1x32xf32, #tpu.memory_space<vmem>>, %arg4: memref<32x96xf32, #tpu.memory_space<vmem>>, %arg5: memref<1x96xf32, #tpu.memory_space<vmem>>, %arg6: memref<16x96xf32, #tpu.memory_space<vmem>>) attributes {dimension_semantics = [#tpu.dimension_semantics<parallel>], iteration_bounds = array<i64: 1>, scalar_prefetch = 0 : i64, scratch_operands = 0 : i64, tpu.core_type = #tpu.core_type<tc>, window_params = [{transform_indices = @transform_0, window_bounds = array<i64: 16, 32>}, {pipeline_mode = #tpu.pipeline_mode<synchronous>, transform_indices = @transform_1, window_bounds = array<i64: 1, 32>}, {pipeline_mode = #tpu.pipeline_mode<synchronous>, transform_indices = @transform_2, window_bounds = array<i64: 1, 32>}, {pipeline_mode = #tpu.pipeline_mode<synchronous>, transform_indices = @transform_3, window_bounds = array<i64: 32, 96>}, {pipeline_mode = #tpu.pipeline_mode<synchronous>, transform_indices = @transform_4, window_bounds = array<i64: 1, 96>}, {transform_indices = @transform_5, window_bounds = array<i64: 16, 96>}]} {
    %c0 = arith.constant 0 : index
    %c0_0 = arith.constant 0 : index
    %0 = vector.load %arg1[%c0, %c0_0] : memref<16x32xf32, #tpu.memory_space<vmem>>, vector<16x32xf32>
    %c0_1 = arith.constant 0 : index
    %c0_2 = arith.constant 0 : index
    %1 = vector.load %arg2[%c0_1, %c0_2] : memref<1x32xf32, #tpu.memory_space<vmem>>, vector<1x32xf32>
    %c0_3 = arith.constant 0 : index
    %c0_4 = arith.constant 0 : index
    %2 = vector.load %arg3[%c0_3, %c0_4] : memref<1x32xf32, #tpu.memory_space<vmem>>, vector<1x32xf32>
    %cst = arith.constant dense<0.000000e+00> : vector<16xf32>
    %3 = vector.multi_reduction <add>, %0, %cst [1] : vector<16x32xf32> to vector<16xf32>
    %4 = vector.shape_cast %3 : vector<16xf32> to vector<16x1xf32>
    %cst_5 = arith.constant 3.200000e+01 : f32
    %5 = vector.broadcast %cst_5 : f32 to vector<16x1xf32>
    %6 = arith.divf %4, %5 : vector<16x1xf32>
    %7 = vector.broadcast %6 : vector<16x1xf32> to vector<16x32xf32>
    %8 = arith.subf %0, %7 : vector<16x32xf32>
    %9 = arith.mulf %8, %8 : vector<16x32xf32>
    %cst_6 = arith.constant dense<0.000000e+00> : vector<16xf32>
    %10 = vector.multi_reduction <add>, %9, %cst_6 [1] : vector<16x32xf32> to vector<16xf32>
    %11 = vector.shape_cast %10 : vector<16xf32> to vector<16x1xf32>
    %cst_7 = arith.constant 3.200000e+01 : f32
    %12 = vector.broadcast %cst_7 : f32 to vector<16x1xf32>
    %13 = arith.divf %11, %12 : vector<16x1xf32>
    %14 = vector.broadcast %6 : vector<16x1xf32> to vector<16x32xf32>
    %15 = arith.subf %0, %14 : vector<16x32xf32>
    %cst_8 = arith.constant 9.99999974E-6 : f32
    %16 = vector.broadcast %cst_8 : f32 to vector<16x1xf32>
    %17 = arith.addf %13, %16 : vector<16x1xf32>
    %18 = math.rsqrt %17 : vector<16x1xf32>
    %19 = vector.broadcast %18 : vector<16x1xf32> to vector<16x32xf32>
    %20 = arith.mulf %15, %19 : vector<16x32xf32>
    %21 = vector.broadcast %1 : vector<1x32xf32> to vector<16x32xf32>
    %22 = arith.mulf %20, %21 : vector<16x32xf32>
    %23 = vector.broadcast %2 : vector<1x32xf32> to vector<16x32xf32>
    %24 = arith.addf %22, %23 : vector<16x32xf32>
    %c0_9 = arith.constant 0 : index
    %c0_10 = arith.constant 0 : index
    %25 = vector.load %arg4[%c0_9, %c0_10] : memref<32x96xf32, #tpu.memory_space<vmem>>, vector<32x96xf32>
    %cst_11 = arith.constant dense<0.000000e+00> : vector<16x96xf32>
    %26 = tpu.matmul %24, %25, %cst_11 {dimension_numbers = #tpu.dot_dimension_numbers<[1], [0], [0], [1], [0, 0, 1, 1], [], []>} : vector<16x32xf32>, vector<32x96xf32>, vector<16x96xf32> -> vector<16x96xf32>
    %c0_12 = arith.constant 0 : index
    %c0_13 = arith.constant 0 : index
    %27 = vector.load %arg5[%c0_12, %c0_13] : memref<1x96xf32, #tpu.memory_space<vmem>>, vector<1x96xf32>
    %28 = vector.broadcast %27 : vector<1x96xf32> to vector<16x96xf32>
    %29 = arith.addf %26, %28 : vector<16x96xf32>
    %c0_14 = arith.constant 0 : index
    %c0_15 = arith.constant 0 : index
    %30 = vector.load %arg6[%c0_14, %c0_15] : memref<16x96xf32, #tpu.memory_space<vmem>>, vector<16x96xf32>
    tpu.vector_store %arg6[%c0_14, %c0_15], %29 {strides = array<i32>} : memref<16x96xf32, #tpu.memory_space<vmem>>, vector<16x96xf32>,
    return
  }
  func.func @transform_0(%arg0: i32) -> (i32, i32) {
    %c0_i32 = arith.constant 0 : i32
    %c0_i32_0 = arith.constant 0 : i32
    return %arg0, %c0_i32 : i32, i32
  }
  func.func @transform_1(%arg0: i32) -> (i32, i32) {
    %c0_i32 = arith.constant 0 : i32
    %c0_i32_0 = arith.constant 0 : i32
    %c0_i32_1 = arith.constant 0 : i32
    return %c0_i32, %c0_i32_0 : i32, i32
  }
  func.func @transform_2(%arg0: i32) -> (i32, i32) {
    %c0_i32 = arith.constant 0 : i32
    %c0_i32_0 = arith.constant 0 : i32
    %c0_i32_1 = arith.constant 0 : i32
    return %c0_i32, %c0_i32_0 : i32, i32
  }
  func.func @transform_3(%arg0: i32) -> (i32, i32) {
    %c0_i32 = arith.constant 0 : i32
    %c0_i32_0 = arith.constant 0 : i32
    %c0_i32_1 = arith.constant 0 : i32
    return %c0_i32, %c0_i32_0 : i32, i32
  }
  func.func @transform_4(%arg0: i32) -> (i32, i32) {
    %c0_i32 = arith.constant 0 : i32
    %c0_i32_0 = arith.constant 0 : i32
    %c0_i32_1 = arith.constant 0 : i32
    return %c0_i32, %c0_i32_0 : i32, i32
  }
  func.func @transform_5(%arg0: i32) -> (i32, i32) {
    %c0_i32 = arith.constant 0 : i32
    %c0_i32_0 = arith.constant 0 : i32
    return %arg0, %c0_i32 : i32, i32
  }
}

</mosaic_0001>

<llo_original>
// kernel: tpu_custom_call.1
$region0: #{tpu_custom_call.1}
  #allocation0 [shape = 'u32[]', space=smem, size = 0x4, offset = 0x4, fixed_abs, tag = 'smem constant byte address 0x4 - core index']
  #allocation1 [shape = 'u32[144,128]{1,0:T(1,128)}', space=vmem, size = 0x12000, scoped, tag = 'internal scratch']
  %s0 = inlined_call_operand.hbm [shape: f32[16,32], index: 0, kind: input, shape index: {}]
  %s1 = inlined_call_operand.vmem [shape: f32[1,32], index: 1, kind: input, shape index: {}]
  %s2 = inlined_call_operand.vmem [shape: f32[1,32], index: 2, kind: input, shape index: {}]
  %s3 = inlined_call_operand.hbm [shape: f32[32,96], index: 3, kind: input, shape index: {}]
  %s4 = inlined_call_operand.vmem [shape: f32[1,96], index: 4, kind: input, shape index: {}]
  %s5 = inlined_call_operand.hbm [shape: f32[16,96], index: 5, kind: output, shape index: {}]
  %s6 = sld [smem:[#allocation0]]
  $region38: #{tpu_custom_call.1} parent=0
    _
  %s8 = ssub.s32 1, %s6
  %s9 = scalar_select 0, %s8, %s6
  $region1: #{tpu_custom_call.1} parent=0
    #allocation2 [shape = 'u8[8192]{0}', space=vmem, size = 0x2000, scoped, tag = 'input window, operand 0, single buffered']
    #allocation3 [shape = 's32[1]{0}', space=sflag, size = 0x4, scoped, tag = 'scoped memory for tpu_custom_call.1']
    #allocation4 [shape = 's32[1]{0}', space=sflag, size = 0x4, scoped, tag = 'scoped memory for tpu_custom_call.1']
    #allocation5 [shape = 'u8[16384]{0}', space=vmem, size = 0x4000, scoped, tag = 'input window, operand 3, single buffered']
    #allocation6 [shape = 's32[1]{0}', space=sflag, size = 0x4, scoped, tag = 'scoped memory for tpu_custom_call.1']
    #allocation7 [shape = 'u8[8192]{0}', space=vmem, size = 0x2000, scoped, tag = 'output window, operand 0, single buffered']
    %10 = vsyncpa [#allocation3], 0
    %11 = vsyncpa [#allocation6], 0
    %12 = vsyncpa [#allocation4], 0
    // Predicated region
    $region2: #{tpu_custom_call.1} parent=1 // pred_check
      _
    $region3: #{tpu_custom_call.1} parent=1 // pred_check_branch
      %14 = sbr.rel (0) target = $region5
    $region4: #{tpu_custom_call.1} parent=1 // pred_region
      %s16 = ssub.s32 256, 256
      %17 = vsyncadd [#allocation3], %s16
      %s18 = sshll.u32 [#allocation2], 4
      %s19 = int_to_ptr.vmem [resolvable:$true] %s18
      %24 = dma.hbm_to_vmem [thread:$0]  %s0, 256, %s19, [#allocation3], 128, 128, 8
    $region5: #{tpu_custom_call.1} parent=1 // pred_fallthru
      _
    // Predicated region
    $region6: #{tpu_custom_call.1} parent=1 // pred_check
      _
    $region7: #{tpu_custom_call.1} parent=1 // pred_check_branch
      %26 = sbr.rel (0) target = $region9
    $region8: #{tpu_custom_call.1} parent=1 // pred_region
      _
    $region9: #{tpu_custom_call.1} parent=1 // pred_fallthru
      _
    // Predicated region
    $region10: #{tpu_custom_call.1} parent=1 // pred_check
      _
    $region11: #{tpu_custom_call.1} parent=1 // pred_check_branch
      %28 = sbr.rel (0) target = $region13
    $region12: #{tpu_custom_call.1} parent=1 // pred_region
      _
    $region13: #{tpu_custom_call.1} parent=1 // pred_fallthru
      _
    // Predicated region
    $region14: #{tpu_custom_call.1} parent=1 // pred_check
      _
    $region15: #{tpu_custom_call.1} parent=1 // pred_check_branch
      %30 = sbr.rel (0) target = $region17
    $region16: #{tpu_custom_call.1} parent=1 // pred_region
      %s32 = ssub.s32 512, 512
      %33 = vsyncadd [#allocation6], %s32
      %s34 = sshll.u32 [#allocation5], 4
      %s35 = int_to_ptr.vmem [resolvable:$true] %s34
      %40 = dma.hbm_to_vmem [thread:$0]  %s3, 512, %s35, [#allocation6], 128, 128, 8
    $region17: #{tpu_custom_call.1} parent=1 // pred_fallthru
      _
    // Predicated region
    $region18: #{tpu_custom_call.1} parent=1 // pred_check
      _
    $region19: #{tpu_custom_call.1} parent=1 // pred_check_branch
      %42 = sbr.rel (0) target = $region21
    $region20: #{tpu_custom_call.1} parent=1 // pred_region
      _
    $region21: #{tpu_custom_call.1} parent=1 // pred_fallthru
      _
    // Predicated region
    $region22: #{tpu_custom_call.1} parent=1 // pred_check
      _
    $region23: #{tpu_custom_call.1} parent=1 // pred_check_branch
      %44 = sbr.rel (0) target = $region25
    $region24: #{tpu_custom_call.1} parent=1 // pred_region
      %45 = dma.done [#allocation3], 256
    $region25: #{tpu_custom_call.1} parent=1 // pred_fallthru
      _
    // Predicated region
    $region26: #{tpu_custom_call.1} parent=1 // pred_check
      _
    $region27: #{tpu_custom_call.1} parent=1 // pred_check_branch
      %47 = sbr.rel (0) target = $region29
    $region28: #{tpu_custom_call.1} parent=1 // pred_region
      %48 = dma.done [#allocation6], 512
    $region29: #{tpu_custom_call.1} parent=1 // pred_fallthru
      _
    %v49 = vld [vmem:[#allocation2] sm:$0xff]
    %v50 = vld [vmem:[#allocation2 + $0x8] sm:$0xff]
    %v51 = vld [vmem:[%s1] sm:$0x1]
    %v52 = vld [vmem:[%s2] sm:$0x1]
    %vm53 = vcmask 261120
    %v54 = vsel %vm53, %v49, 0.0
    %55 = vadd.xlane.f32.xlu0 %v54
    %v56 = vpop.xlane.xlu0 %55
    %v57 = vsel %vm53, %v50, 0.0
    %58 = vadd.xlane.f32.xlu0 %v57
    %v59 = vpop.xlane.xlu0 %58
    %v60 = vrcp.pop 32.0
    %v61 = vmul.f32 %v56, %v60
    %v62 = vmul.f32 %v59, %v60
    %v63 = vsub.f32 %v49, %v61
    %v64 = vsub.f32 %v50, %v62
    %v65 = vmul.f32 %v63, %v63
    %v66 = vmul.f32 %v64, %v64
    %v67 = vsel %vm53, %v65, 0.0
    %68 = vadd.xlane.f32.xlu0 %v67
    %v69 = vpop.xlane.xlu0 %68
    %v70 = vsel %vm53, %v66, 0.0
    %71 = vadd.xlane.f32.xlu0 %v70
    %v72 = vpop.xlane.xlu0 %71
    %v73 = vmul.f32 %v69, %v60
    %v74 = vmul.f32 %v72, %v60
    %v75 = vadd.f32 %v73, 1e-05
    %v76 = vadd.f32 %v74, 1e-05
    %v77 = vrsqrt.pop %v75
    %v78 = vrsqrt.pop %v76
    %v79 = vmul.f32 %v63, %v77
    %v80 = vmul.f32 %v64, %v78
    %v82 = vlaneseq
    %v83 = vshrl.u32 %v82, 7
    %v84 = vsub.s32 0, %v83
    %v85 = vrot.slane %v51, %v84
    %v87 = vmul.f32 %v79, %v85
    %v88 = vmul.f32 %v80, %v85
    %v90 = vlaneseq
    %v91 = vshrl.u32 %v90, 7
    %v92 = vsub.s32 0, %v91
    %v93 = vrot.slane %v52, %v92
    %v95 = vadd.f32 %v87, %v93
    %v96 = vadd.f32 %v88, %v93
    %v97 = vld [vmem:[#allocation5] sm:$0xff]
    %v98 = vld [vmem:[#allocation5 + $0x8] sm:$0xff]
    %v99 = vld [vmem:[#allocation5 + $0x10] sm:$0xff]
    %v100 = vld [vmem:[#allocation5 + $0x18] sm:$0xff]
    %v101 = vld [vmem:[%s4] sm:$0x1]
    %v103 = vlaneseq
    %v104 = vshrl.u32 %v103, 7
    %v105 = vsub.s32 0, %v104
    %v106 = vrot.slane %v101, %v105
    %v109 = vsel %vm53, %v95, 0
    %v112 = vsel %vm53, %v96, 0
    %114 = vmatprep.subr.mxu0 0.0
    %115 = vmatpush1.msra.mxu0 %v97
    %116 = vmatprep.subr.mxu0 0.0
    %117 = vmatpush1.msra.mxu0 %v98
    %118 = vmatprep.subr.mxu0 0.0
    %119 = vmatpush1.msra.mxu0 %v99
    %120 = vmatprep.subr.mxu0 0.0
    %121 = vmatpush1.msra.mxu0 %v100
    %122 = vmatprep.subr.mxu0 0.0
    %123 = vmatpush1.msra.mxu0 0.0
    %124 = vmatprep.subr.mxu0 0.0
    %125 = vmatpush1.msra.mxu0 0.0
    %126 = vmatprep.subr.mxu0 0.0
    %127 = vmatpush1.msra.mxu0 0.0
    %128 = vmatprep.subr.mxu0 0.0
    %129 = vmatpush1.msra.mxu0 0.0
    %130 = vmatprep.subr.mxu0 0.0
    %131 = vmatpush1.msra.mxu0 0.0
    %132 = vmatprep.subr.mxu0 0.0
    %133 = vmatpush1.msra.mxu0 0.0
    %134 = vmatprep.subr.mxu0 0.0
    %135 = vmatpush1.msra.mxu0 0.0
    %136 = vmatprep.subr.mxu0 0.0
    %137 = vmatpush1.msra.mxu0 0.0
    %138 = vmatprep.subr.mxu0 0.0
    %139 = vmatpush1.msra.mxu0 0.0
    %140 = vmatprep.subr.mxu0 0.0
    %141 = vmatpush1.msra.mxu0 0.0
    %142 = vmatprep.subr.mxu0 0.0
    %143 = vmatpush1.msra.mxu0 0.0
    %144 = vmatprep.subr.mxu0 0.0
    %145 = vmatpush1.msra.mxu0 0.0
    %146 = vmatprep.subr.mxu0 0.0
    %147 = vmatpush1.msra.mxu0 0.0
    %148 = vmatprep.subr.mxu0 0.0
    %149 = vmatpush1.msra.mxu0 0.0
    %150 = vmatprep.subr.mxu0 0.0
    %151 = vmatpush1.msra.mxu0 0.0
    %152 = vmatprep.subr.mxu0 0.0
    %153 = vmatpush1.msra.mxu0 0.0
    %154 = vmatprep.subr.mxu0 0.0
    %155 = vmatpush1.msra.mxu0 0.0
    %156 = vmatprep.subr.mxu0 0.0
    %157 = vmatpush1.msra.mxu0 0.0
    %158 = vmatprep.subr.mxu0 0.0
    %159 = vmatpush1.msra.mxu0 0.0
    %160 = vmatprep.subr.mxu0 0.0
    %161 = vmatpush1.msra.mxu0 0.0
    %162 = vmatprep.subr.mxu0 0.0
    %163 = vmatpush1.msra.mxu0 0.0
    %164 = vmatprep.subr.mxu0 0.0
    %165 = vmatpush1.msra.mxu0 0.0
    %166 = vmatprep.subr.mxu0 0.0
    %167 = vmatpush1.msra.mxu0 0.0
    %168 = vmatprep.subr.mxu0 0.0
    %169 = vmatpush1.msra.mxu0 0.0
    %170 = vmatprep.subr.mxu0 0.0
    %171 = vmatpush1.msra.mxu0 0.0
    %172 = vmatprep.subr.mxu0 0.0
    %173 = vmatpush1.msra.mxu0 0.0
    %174 = vmatprep.subr.mxu0 0.0
    %175 = vmatpush1.msra.mxu0 0.0
    %176 = vmatprep.subr.mxu0 0.0
    %177 = vmatpush1.msra.mxu0 0.0
    %178 = vmatprep.mubr.f32.mxu0 0.0
    %179 = vmatmul.mubr.f32.gmra.mrb[0].mxu0 %v109
    %v180 = vpop.f32.mrb[0].mxu0
    %v181 = vadd.f32 %v106, %v180
    %v182 = vpop.f32.mrb[0].mxu0
    %183 = vmatprep.mubr.f32.mxu0 0.0
    %184 = vmatmul.mubr.f32.gmra.mrb[0].mxu0 %v112
    %v185 = vpop.f32.mrb[0].mxu0
    %v186 = vadd.f32 %v106, %v185
    %v187 = vpop.f32.mrb[0].mxu0
    %188 = vdwg.mxu0
    %vm189 = vcmask 785408
    %190 = vst.msk [vmem:[#allocation7] sm:$0xff] %vm189, %v181
    %191 = vst.msk [vmem:[#allocation7 + $0x8] sm:$0xff] %vm189, %v186
    // Predicated region
    $region30: #{tpu_custom_call.1} parent=1 // pred_check
      _
    $region31: #{tpu_custom_call.1} parent=1 // pred_check_branch
      %193 = sbr.rel (0) target = $region33
    $region32: #{tpu_custom_call.1} parent=1 // pred_region
      %s195 = ssub.s32 256, 256
      %196 = vsyncadd [#allocation4], %s195
      %s197 = sshll.u32 [#allocation7], 4
      %s198 = int_to_ptr.vmem [resolvable:$true] %s197
      %203 = dma.vmem_to_hbm [thread:$0]  %s198, 256, %s5, [#allocation4], 128, 128, 8
    $region33: #{tpu_custom_call.1} parent=1 // pred_fallthru
      _
    // Predicated region
    $region34: #{tpu_custom_call.1} parent=1 // pred_check
      _
    $region35: #{tpu_custom_call.1} parent=1 // pred_check_branch
      %205 = sbr.rel (0) target = $region37
    $region36: #{tpu_custom_call.1} parent=1 // pred_region
      %206 = dma.done [#allocation4], 256
    $region37: #{tpu_custom_call.1} parent=1 // pred_fallthru
      _
    %207 = vsyncpa [#allocation3], 1
    %208 = vsyncpa [#allocation6], 1
    %209 = vsyncpa [#allocation4], 1

</llo_original>
